<compile_context>
chip_gen: v6e
topology: v6e:2x2x1
jax: 0.10.0
libtpu: 0.0.40
codegen_flags: <defaults>
</compile_context>

<pallas_src>
import functools

import jax
import jax.numpy as jnp
from jax.experimental import pallas as pl
from jax.experimental.pallas import tpu as pltpu


def _round_up(x, m):
    return (x + m - 1) // m * m


def _kd_kernel(s0_ref, s1_ref, t0_ref, t1_ref, kl_out_ref, sq_out_ref,
               acc_kl, acc_sq, *, inv_temp):
    """One (C, R, 128) spatial tile of one batch element, both pairs fused.

    Grid = (num_hw_chunks, N): axis 0 ('parallel') selects the spatial chunk
    and indexes the per-chunk partial-sum outputs; axis 1 ('arbitrary', last)
    is the batch reduction accumulated in (R, 128) f32 VMEM scratch.
    """
    n = pl.program_id(1)

    @pl.when(n == 0)
    def _():
        acc_kl[...] = jnp.zeros_like(acc_kl)
        acc_sq[...] = jnp.zeros_like(acc_sq)

    def _accumulate(s_ref, t_ref):
        # (C, R, 128): channel on the leading slab axis, spatial on
        # (sublane, lane).  Every VPU/EUP op below runs on full-density vregs
        # and the channel reductions are plain elementwise ops across slabs.
        s = s_ref[...].astype(jnp.float32)
        t = t_ref[...].astype(jnp.float32)

        s_scaled = s * jnp.float32(inv_temp)
        t_scaled = t * jnp.float32(inv_temp)

        # log_softmax(student / T) over the channel axis (axis 0).
        s_max = jnp.max(s_scaled, axis=0, keepdims=True)
        s_shift = s_scaled - s_max
        s_lse = jnp.log(jnp.sum(jnp.exp(s_shift), axis=0, keepdims=True))
        s_logp = s_shift - s_lse                                  # (C, R, 128)

        # softmax(teacher / T) pieces over the channel axis.
        t_max = jnp.max(t_scaled, axis=0, keepdims=True)
        t_shift = t_scaled - t_max
        t_exp = jnp.exp(t_shift)
        t_sum = jnp.sum(t_exp, axis=0, keepdims=True)             # (1, R, 128)
        t_logsum = jnp.log(t_sum)

        # Per-pixel KL:  sum_C t_prob * (t_logp - s_logp)
        #   = (1/t_sum) * sum_C t_exp * (t_shift - log(t_sum) - s_logp)
        # pl.reciprocal goes to the EUP slot and only touches (R, 128).
        w = t_exp * (t_shift - t_logsum - s_logp)                 # (C, R, 128)
        kl_col = jnp.sum(w, axis=0) * pl.reciprocal(t_sum[0], approx=False)
        acc_kl[...] += kl_col                                     # (R, 128)

        # Per-pixel squared error on the *unscaled* predictions.
        diff = s - t
        acc_sq[...] += jnp.sum(diff * diff, axis=0)               # (R, 128)

    _accumulate(s0_ref, t0_ref)
    _accumulate(s1_ref, t1_ref)

    # Lane-dense partial writeback once per hw-chunk: only a sublane
    # reduction happens in-kernel; the final 128-lane sum is done in JAX.
    @pl.when(n == pl.num_programs(1) - 1)
    def _():
        kl_out_ref[...] = jnp.sum(acc_kl[...], axis=0, keepdims=True)
        sq_out_ref[...] = jnp.sum(acc_sq[...], axis=0, keepdims=True)


def _choose_row_tile(n_rows, c, dtype_bytes,
                     target_block_bytes=1 << 20,
                     min_block_bytes=512 << 10):
    """Rows (groups of 128 lanes) per block.  Multiple of 8, chosen so that:
      (a) one input block is near `target_block_bytes` (4 fused inputs then
          give a 2-4 MiB per-step DMA payload amortizing the ~0.35 us step
          overhead);
      (b) the 'parallel' hw-chunk axis keeps >= 4 (else >= 2) chunks whenever
          that doesn't shrink blocks below `min_block_bytes` (v7x megacore);
      (c) the double-buffered footprint stays far below v7x's 64 MiB VMEM.
    """
    row_bytes = c * 128 * dtype_bytes
    r_budget = max(8, (target_block_bytes // row_bytes) // 8 * 8)
    for chunks in (4, 2):
        r_cap = _round_up(pl.cdiv(n_rows, chunks), 8)
        if r_cap * row_bytes >= min_block_bytes:
            return min(r_budget, r_cap)
    return min(r_budget, _round_up(n_rows, 8))


def _prep(x, n_rows):
    """(N, C, H, W) -> (N, C, n_rows, 128) with zero-padded spatial tail.

    Zero-padded columns contribute exactly 0 to both losses: student and
    teacher see identical all-zero logits (KL term cancels bit-exactly) and
    their difference is zero (squared error term is zero)."""
    N, C, H, W = x.shape
    hw = H * W
    x3 = x.reshape(N, C, hw)
    pad = n_rows * 128 - hw
    if pad:
        x3 = jnp.pad(x3, ((0, 0), (0, 0), (0, pad)))
    return x3.reshape(N, C, n_rows, 128)


def _kd_partial_sums(s0, s1, t0, t1, temperature):
    """Return (kl_sum, sq_sum) over both prediction pairs (one pallas_call)."""
    assert s0.shape == s1.shape == t0.shape == t1.shape, (
        s0.shape, s1.shape, t0.shape, t1.shape)
    N, C, H, W = s0.shape
    hw = H * W
    n_rows0 = pl.cdiv(hw, 128)

    dtype_bytes = jnp.dtype(s0.dtype).itemsize
    R = _choose_row_tile(n_rows0, C, dtype_bytes)
    n_rows = _round_up(n_rows0, R)
    num_j = n_rows // R

    ins = tuple(_prep(x, n_rows) for x in (s0, s1, t0, t1))

    kernel = functools.partial(_kd_kernel, inv_temp=1.0 / float(temperature))
    in_spec = pl.BlockSpec((None, C, R, 128), lambda j, n: (n, 0, j, 0))
    out_spec = pl.BlockSpec((None, 1, 128), lambda j, n: (j, 0, 0))

    # Footprint: 4 inputs x 2 buffers x (~1 MiB) block + two (R,128) f32
    # accumulators + in-kernel f32 temporaries — comfortably inside 48 MiB,
    # which itself sits inside v7x's 64 MiB physical VMEM per TensorCore.
    vmem_limit = 48 * 1024 * 1024

    kl_part, sq_part = pl.pallas_call(
        kernel,
        out_shape=(
            jax.ShapeDtypeStruct((num_j, 1, 128), jnp.float32),
            jax.ShapeDtypeStruct((num_j, 1, 128), jnp.float32),
        ),
        grid_spec=pltpu.PrefetchScalarGridSpec(
            num_scalar_prefetch=0,
            grid=(num_j, N),
            in_specs=[in_spec, in_spec, in_spec, in_spec],
            out_specs=(out_spec, out_spec),
            scratch_shapes=[
                pltpu.VMEM((R, 128), jnp.float32),
                pltpu.VMEM((R, 128), jnp.float32),
            ],
        ),
        compiler_params=pltpu.CompilerParams(
            dimension_semantics=("parallel", "arbitrary"),
            vmem_limit_bytes=vmem_limit,
        ),
    )(*ins)

    return jnp.sum(kl_part), jnp.sum(sq_part)


class DistillLossWithPixelChangeStar:
    """JAX/Pallas port of DistillLossWithPixel_ChangeStar (forward only)."""

    def __init__(self, temperature=1.0, loss_weight=1.0, pixel_weight=1.0,
                 loss_name="distill_loss", **kwargs):
        self.temperature = temperature
        self.loss_weight = loss_weight
        self.pixel_weight = pixel_weight
        self._loss_name = loss_name

    def __call__(self, student_pred, teacher_pred, **kwargs):
        # The torch.cat along dim 0 is never materialized: the KL and squared
        # error sums over the concatenated tensor are additive over the two
        # prediction maps, which are processed together in a single fused
        # pallas_call (4 inputs) and normalized here.
        s0, s1 = student_pred[0], student_pred[1]
        t0, t1 = teacher_pred[0], teacher_pred[1]

        kl_sum, sq_sum = _kd_partial_sums(s0, s1, t0, t1, self.temperature)

        N, C, H, W = s0.shape
        batch_total = 2 * N              # cat([p0, p1], dim=0)
        elem_total = 2 * N * C * H * W

        class_distill_loss = (kl_sum / jnp.float32(batch_total)) * jnp.float32(
            self.temperature ** 2)
        pixel_distill_loss = sq_sum / jnp.float32(elem_total)
        return (self.loss_weight * class_distill_loss
                + self.pixel_weight * pixel_distill_loss)

    @property
    def loss_name(self):
        return self._loss_name


def _reference(student_pred, teacher_pred, temperature, loss_weight,
               pixel_weight):
    """Pure-JAX reference for correctness check."""
    s = jnp.concatenate([student_pred[0], student_pred[1]], axis=0)
    t = jnp.concatenate([teacher_pred[0], teacher_pred[1]], axis=0)
    s_logp = jax.nn.log_softmax(s / temperature, axis=1)
    t_p = jax.nn.softmax(t / temperature, axis=1)
    t_logp = jax.nn.log_softmax(t / temperature, axis=1)
    kl = jnp.sum(t_p * (t_logp - s_logp)) / s.shape[0]
    class_loss = kl * temperature ** 2
    pixel_loss = jnp.mean((s - t) ** 2)
    return loss_weight * class_loss + pixel_weight * pixel_loss


if __name__ == "__main__":
    key = jax.random.PRNGKey(0)
    keys = jax.random.split(key, 8)

    def run_case(N, C, H, W, temperature, loss_weight, pixel_weight, subkeys):
        k0, k1, k2, k3 = subkeys
        student = (jax.random.normal(k0, (N, C, H, W), dtype=jnp.float32),
                   jax.random.normal(k1, (N, C, H, W), dtype=jnp.float32))
        teacher = (jax.random.normal(k2, (N, C, H, W), dtype=jnp.float32),
                   jax.random.normal(k3, (N, C, H, W), dtype=jnp.float32))
        mod = DistillLossWithPixelChangeStar(
            temperature=temperature, loss_weight=loss_weight,
            pixel_weight=pixel_weight)
        out = jax.block_until_ready(mod(student, teacher))
        ref = _reference(student, teacher, temperature, loss_weight,
                         pixel_weight)
        assert jnp.allclose(out, ref, rtol=1e-4, atol=1e-5), (out, ref)
        return out

    # Main small case (HW = 256, a multiple of 128).
    run_case(2, 4, 16, 16, 2.0, 1.0, 0.5, keys[:4])
    # Ragged spatial size (HW = 100, not a multiple of 128) exercises the
    # zero-padded tail path.
    run_case(2, 3, 10, 10, 1.5, 1.0, 1.0, keys[4:])

    print("KERNEL_OK")
</pallas_src>

<mosaic_0001>
module attributes {stable_mosaic.version = 11 : i64} {
  func.func @_kd_kernel(%arg0: i32, %arg1: i32, %arg2: memref<1x4x8x128xf32, #tpu.memory_space<vmem>>, %arg3: memref<1x4x8x128xf32, #tpu.memory_space<vmem>>, %arg4: memref<1x4x8x128xf32, #tpu.memory_space<vmem>>, %arg5: memref<1x4x8x128xf32, #tpu.memory_space<vmem>>, %arg6: memref<1x1x128xf32, #tpu.memory_space<vmem>>, %arg7: memref<1x1x128xf32, #tpu.memory_space<vmem>>, %arg8: memref<8x128xf32, #tpu.memory_space<vmem>>, %arg9: memref<8x128xf32, #tpu.memory_space<vmem>>) attributes {dimension_semantics = [#tpu.dimension_semantics<parallel>, #tpu.dimension_semantics<arbitrary>], iteration_bounds = array<i64: 1, 2>, scalar_prefetch = 0 : i64, scratch_operands = 2 : i64, tpu.core_type = #tpu.core_type<tc>, window_params = [{transform_indices = @transform_0, window_bounds = array<i64: 1, 4, 8, 128>}, {transform_indices = @transform_1, window_bounds = array<i64: 1, 4, 8, 128>}, {transform_indices = @transform_2, window_bounds = array<i64: 1, 4, 8, 128>}, {transform_indices = @transform_3, window_bounds = array<i64: 1, 4, 8, 128>}, {transform_indices = @transform_4, window_bounds = array<i64: 1, 1, 128>}, {transform_indices = @transform_5, window_bounds = array<i64: 1, 1, 128>}]} {
    %c0_i32 = arith.constant 0 : i32
    %0 = arith.cmpi eq, %arg1, %c0_i32 : i32
    %1 = arith.extui %0 : i1 to i32
    %c0_i32_0 = arith.constant 0 : i32
    %2 = arith.cmpi ne, %1, %c0_i32_0 : i32
    scf.if %2 {
      %cst_48 = arith.constant 0.000000e+00 : f32
      %92 = vector.broadcast %cst_48 : f32 to vector<8x128xf32>
      %c0_49 = arith.constant 0 : index
      %c0_50 = arith.constant 0 : index
      %93 = vector.load %arg8[%c0_49, %c0_50] : memref<8x128xf32, #tpu.memory_space<vmem>>, vector<8x128xf32>
      tpu.vector_store %arg8[%c0_49, %c0_50], %92 {strides = array<i32>} : memref<8x128xf32, #tpu.memory_space<vmem>>, vector<8x128xf32>,
      %cst_51 = arith.constant 0.000000e+00 : f32
      %94 = vector.broadcast %cst_51 : f32 to vector<8x128xf32>
      %c0_52 = arith.constant 0 : index
      %c0_53 = arith.constant 0 : index
      %95 = vector.load %arg9[%c0_52, %c0_53] : memref<8x128xf32, #tpu.memory_space<vmem>>, vector<8x128xf32>
      tpu.vector_store %arg9[%c0_52, %c0_53], %94 {strides = array<i32>} : memref<8x128xf32, #tpu.memory_space<vmem>>, vector<8x128xf32>,
    } else {
    }
    %c0 = arith.constant 0 : index
    %c0_1 = arith.constant 0 : index
    %c0_2 = arith.constant 0 : index
    %c0_3 = arith.constant 0 : index
    %3 = vector.load %arg2[%c0, %c0_1, %c0_2, %c0_3] : memref<1x4x8x128xf32, #tpu.memory_space<vmem>>, vector<1x4x8x128xf32>
    %4 = vector.shape_cast %3 : vector<1x4x8x128xf32> to vector<4x8x128xf32>
    %c0_4 = arith.constant 0 : index
    %c0_5 = arith.constant 0 : index
    %c0_6 = arith.constant 0 : index
    %c0_7 = arith.constant 0 : index
    %5 = vector.load %arg4[%c0_4, %c0_5, %c0_6, %c0_7] : memref<1x4x8x128xf32, #tpu.memory_space<vmem>>, vector<1x4x8x128xf32>
    %6 = vector.shape_cast %5 : vector<1x4x8x128xf32> to vector<4x8x128xf32>
    %cst = arith.constant 5.000000e-01 : f32
    %7 = vector.broadcast %cst : f32 to vector<4x8x128xf32>
    %8 = arith.mulf %4, %7 : vector<4x8x128xf32>
    %cst_8 = arith.constant 5.000000e-01 : f32
    %9 = vector.broadcast %cst_8 : f32 to vector<4x8x128xf32>
    %10 = arith.mulf %6, %9 : vector<4x8x128xf32>
    %cst_9 = arith.constant dense<0xFF800000> : vector<8x128xf32>
    %11 = vector.multi_reduction <maximumf>, %8, %cst_9 [0] : vector<4x8x128xf32> to vector<8x128xf32>
    %12 = vector.shape_cast %11 : vector<8x128xf32> to vector<1x8x128xf32>
    %13 = vector.broadcast %12 : vector<1x8x128xf32> to vector<4x8x128xf32>
    %14 = arith.subf %8, %13 : vector<4x8x128xf32>
    %15 = math.exp %14 : vector<4x8x128xf32>
    %cst_10 = arith.constant dense<0.000000e+00> : vector<8x128xf32>
    %16 = vector.multi_reduction <add>, %15, %cst_10 [0] : vector<4x8x128xf32> to vector<8x128xf32>
    %17 = vector.shape_cast %16 : vector<8x128xf32> to vector<1x8x128xf32>
    %18 = math.log %17 : vector<1x8x128xf32>
    %19 = vector.broadcast %18 : vector<1x8x128xf32> to vector<4x8x128xf32>
    %20 = arith.subf %14, %19 : vector<4x8x128xf32>
    %cst_11 = arith.constant dense<0xFF800000> : vector<8x128xf32>
    %21 = vector.multi_reduction <maximumf>, %10, %cst_11 [0] : vector<4x8x128xf32> to vector<8x128xf32>
    %22 = vector.shape_cast %21 : vector<8x128xf32> to vector<1x8x128xf32>
    %23 = vector.broadcast %22 : vector<1x8x128xf32> to vector<4x8x128xf32>
    %24 = arith.subf %10, %23 : vector<4x8x128xf32>
    %25 = math.exp %24 : vector<4x8x128xf32>
    %cst_12 = arith.constant dense<0.000000e+00> : vector<8x128xf32>
    %26 = vector.multi_reduction <add>, %25, %cst_12 [0] : vector<4x8x128xf32> to vector<8x128xf32>
    %27 = vector.shape_cast %26 : vector<8x128xf32> to vector<1x8x128xf32>
    %28 = math.log %27 : vector<1x8x128xf32>
    %29 = vector.broadcast %28 : vector<1x8x128xf32> to vector<4x8x128xf32>
    %30 = arith.subf %24, %29 : vector<4x8x128xf32>
    %31 = arith.subf %30, %20 : vector<4x8x128xf32>
    %32 = arith.mulf %25, %31 : vector<4x8x128xf32>
    %cst_13 = arith.constant dense<0.000000e+00> : vector<8x128xf32>
    %33 = vector.multi_reduction <add>, %32, %cst_13 [0] : vector<4x8x128xf32> to vector<8x128xf32>
    %34 = vector.shape_cast %27 : vector<1x8x128xf32> to vector<8x128xf32>
    %35 = tpu.reciprocal %34 : vector<8x128xf32> -> vector<8x128xf32>
    %36 = arith.mulf %33, %35 : vector<8x128xf32>
    %c0_14 = arith.constant 0 : index
    %c0_15 = arith.constant 0 : index
    %37 = vector.load %arg8[%c0_14, %c0_15] : memref<8x128xf32, #tpu.memory_space<vmem>>, vector<8x128xf32>
    %38 = arith.addf %37, %36 : vector<8x128xf32>
    %c0_16 = arith.constant 0 : index
    %c0_17 = arith.constant 0 : index
    %39 = vector.load %arg8[%c0_16, %c0_17] : memref<8x128xf32, #tpu.memory_space<vmem>>, vector<8x128xf32>
    tpu.vector_store %arg8[%c0_16, %c0_17], %38 {strides = array<i32>} : memref<8x128xf32, #tpu.memory_space<vmem>>, vector<8x128xf32>,
    %40 = arith.subf %4, %6 : vector<4x8x128xf32>
    %c0_18 = arith.constant 0 : index
    %c0_19 = arith.constant 0 : index
    %41 = vector.load %arg9[%c0_18, %c0_19] : memref<8x128xf32, #tpu.memory_space<vmem>>, vector<8x128xf32>
    %42 = arith.mulf %40, %40 : vector<4x8x128xf32>
    %cst_20 = arith.constant dense<0.000000e+00> : vector<8x128xf32>
    %43 = vector.multi_reduction <add>, %42, %cst_20 [0] : vector<4x8x128xf32> to vector<8x128xf32>
    %44 = arith.addf %41, %43 : vector<8x128xf32>
    %c0_21 = arith.constant 0 : index
    %c0_22 = arith.constant 0 : index
    %45 = vector.load %arg9[%c0_21, %c0_22] : memref<8x128xf32, #tpu.memory_space<vmem>>, vector<8x128xf32>
    tpu.vector_store %arg9[%c0_21, %c0_22], %44 {strides = array<i32>} : memref<8x128xf32, #tpu.memory_space<vmem>>, vector<8x128xf32>,
    %c0_23 = arith.constant 0 : index
    %c0_24 = arith.constant 0 : index
    %c0_25 = arith.constant 0 : index
    %c0_26 = arith.constant 0 : index
    %46 = vector.load %arg3[%c0_23, %c0_24, %c0_25, %c0_26] : memref<1x4x8x128xf32, #tpu.memory_space<vmem>>, vector<1x4x8x128xf32>
    %47 = vector.shape_cast %46 : vector<1x4x8x128xf32> to vector<4x8x128xf32>
    %c0_27 = arith.constant 0 : index
    %c0_28 = arith.constant 0 : index
    %c0_29 = arith.constant 0 : index
    %c0_30 = arith.constant 0 : index
    %48 = vector.load %arg5[%c0_27, %c0_28, %c0_29, %c0_30] : memref<1x4x8x128xf32, #tpu.memory_space<vmem>>, vector<1x4x8x128xf32>
    %49 = vector.shape_cast %48 : vector<1x4x8x128xf32> to vector<4x8x128xf32>
    %cst_31 = arith.constant 5.000000e-01 : f32
    %50 = vector.broadcast %cst_31 : f32 to vector<4x8x128xf32>
    %51 = arith.mulf %47, %50 : vector<4x8x128xf32>
    %cst_32 = arith.constant 5.000000e-01 : f32
    %52 = vector.broadcast %cst_32 : f32 to vector<4x8x128xf32>
    %53 = arith.mulf %49, %52 : vector<4x8x128xf32>
    %cst_33 = arith.constant dense<0xFF800000> : vector<8x128xf32>
    %54 = vector.multi_reduction <maximumf>, %51, %cst_33 [0] : vector<4x8x128xf32> to vector<8x128xf32>
    %55 = vector.shape_cast %54 : vector<8x128xf32> to vector<1x8x128xf32>
    %56 = vector.broadcast %55 : vector<1x8x128xf32> to vector<4x8x128xf32>
    %57 = arith.subf %51, %56 : vector<4x8x128xf32>
    %58 = math.exp %57 : vector<4x8x128xf32>
    %cst_34 = arith.constant dense<0.000000e+00> : vector<8x128xf32>
    %59 = vector.multi_reduction <add>, %58, %cst_34 [0] : vector<4x8x128xf32> to vector<8x128xf32>
    %60 = vector.shape_cast %59 : vector<8x128xf32> to vector<1x8x128xf32>
    %61 = math.log %60 : vector<1x8x128xf32>
    %62 = vector.broadcast %61 : vector<1x8x128xf32> to vector<4x8x128xf32>
    %63 = arith.subf %57, %62 : vector<4x8x128xf32>
    %cst_35 = arith.constant dense<0xFF800000> : vector<8x128xf32>
    %64 = vector.multi_reduction <maximumf>, %53, %cst_35 [0] : vector<4x8x128xf32> to vector<8x128xf32>
    %65 = vector.shape_cast %64 : vector<8x128xf32> to vector<1x8x128xf32>
    %66 = vector.broadcast %65 : vector<1x8x128xf32> to vector<4x8x128xf32>
    %67 = arith.subf %53, %66 : vector<4x8x128xf32>
    %68 = math.exp %67 : vector<4x8x128xf32>
    %cst_36 = arith.constant dense<0.000000e+00> : vector<8x128xf32>
    %69 = vector.multi_reduction <add>, %68, %cst_36 [0] : vector<4x8x128xf32> to vector<8x128xf32>
    %70 = vector.shape_cast %69 : vector<8x128xf32> to vector<1x8x128xf32>
    %71 = math.log %70 : vector<1x8x128xf32>
    %72 = vector.broadcast %71 : vector<1x8x128xf32> to vector<4x8x128xf32>
    %73 = arith.subf %67, %72 : vector<4x8x128xf32>
    %74 = arith.subf %73, %63 : vector<4x8x128xf32>
    %75 = arith.mulf %68, %74 : vector<4x8x128xf32>
    %cst_37 = arith.constant dense<0.000000e+00> : vector<8x128xf32>
    %76 = vector.multi_reduction <add>, %75, %cst_37 [0] : vector<4x8x128xf32> to vector<8x128xf32>
    %77 = vector.shape_cast %70 : vector<1x8x128xf32> to vector<8x128xf32>
    %78 = tpu.reciprocal %77 : vector<8x128xf32> -> vector<8x128xf32>
    %79 = arith.mulf %76, %78 : vector<8x128xf32>
    %c0_38 = arith.constant 0 : index
    %c0_39 = arith.constant 0 : index
    %80 = vector.load %arg8[%c0_38, %c0_39] : memref<8x128xf32, #tpu.memory_space<vmem>>, vector<8x128xf32>
    %81 = arith.addf %80, %79 : vector<8x128xf32>
    %c0_40 = arith.constant 0 : index
    %c0_41 = arith.constant 0 : index
    %82 = vector.load %arg8[%c0_40, %c0_41] : memref<8x128xf32, #tpu.memory_space<vmem>>, vector<8x128xf32>
    tpu.vector_store %arg8[%c0_40, %c0_41], %81 {strides = array<i32>} : memref<8x128xf32, #tpu.memory_space<vmem>>, vector<8x128xf32>,
    %83 = arith.subf %47, %49 : vector<4x8x128xf32>
    %c0_42 = arith.constant 0 : index
    %c0_43 = arith.constant 0 : index
    %84 = vector.load %arg9[%c0_42, %c0_43] : memref<8x128xf32, #tpu.memory_space<vmem>>, vector<8x128xf32>
    %85 = arith.mulf %83, %83 : vector<4x8x128xf32>
    %cst_44 = arith.constant dense<0.000000e+00> : vector<8x128xf32>
    %86 = vector.multi_reduction <add>, %85, %cst_44 [0] : vector<4x8x128xf32> to vector<8x128xf32>
    %87 = arith.addf %84, %86 : vector<8x128xf32>
    %c0_45 = arith.constant 0 : index
    %c0_46 = arith.constant 0 : index
    %88 = vector.load %arg9[%c0_45, %c0_46] : memref<8x128xf32, #tpu.memory_space<vmem>>, vector<8x128xf32>
    tpu.vector_store %arg9[%c0_45, %c0_46], %87 {strides = array<i32>} : memref<8x128xf32, #tpu.memory_space<vmem>>, vector<8x128xf32>,
    %c1_i32 = arith.constant 1 : i32
    %89 = arith.cmpi eq, %arg1, %c1_i32 : i32
    %90 = arith.extui %89 : i1 to i32
    %c0_i32_47 = arith.constant 0 : i32
    %91 = arith.cmpi ne, %90, %c0_i32_47 : i32
    scf.if %91 {
      %c0_48 = arith.constant 0 : index
      %c0_49 = arith.constant 0 : index
      %92 = vector.load %arg8[%c0_48, %c0_49] : memref<8x128xf32, #tpu.memory_space<vmem>>, vector<8x128xf32>
      %cst_50 = arith.constant dense<0.000000e+00> : vector<128xf32>
      %93 = vector.multi_reduction <add>, %92, %cst_50 [0] : vector<8x128xf32> to vector<128xf32>
      %94 = vector.shape_cast %93 : vector<128xf32> to vector<1x128xf32>
      %c0_51 = arith.constant 0 : index
      %c0_52 = arith.constant 0 : index
      %c0_53 = arith.constant 0 : index
      %95 = vector.load %arg6[%c0_51, %c0_52, %c0_53] : memref<1x1x128xf32, #tpu.memory_space<vmem>>, vector<1x1x128xf32>
      %96 = vector.shape_cast %95 : vector<1x1x128xf32> to vector<1x128xf32>
      %97 = vector.shape_cast %94 : vector<1x128xf32> to vector<1x1x128xf32>
      tpu.vector_store %arg6[%c0_51, %c0_52, %c0_53], %97 {strides = array<i32>} : memref<1x1x128xf32, #tpu.memory_space<vmem>>, vector<1x1x128xf32>,
      %c0_54 = arith.constant 0 : index
      %c0_55 = arith.constant 0 : index
      %98 = vector.load %arg9[%c0_54, %c0_55] : memref<8x128xf32, #tpu.memory_space<vmem>>, vector<8x128xf32>
      %cst_56 = arith.constant dense<0.000000e+00> : vector<128xf32>
      %99 = vector.multi_reduction <add>, %98, %cst_56 [0] : vector<8x128xf32> to vector<128xf32>
      %100 = vector.shape_cast %99 : vector<128xf32> to vector<1x128xf32>
      %c0_57 = arith.constant 0 : index
      %c0_58 = arith.constant 0 : index
      %c0_59 = arith.constant 0 : index
      %101 = vector.load %arg7[%c0_57, %c0_58, %c0_59] : memref<1x1x128xf32, #tpu.memory_space<vmem>>, vector<1x1x128xf32>
      %102 = vector.shape_cast %101 : vector<1x1x128xf32> to vector<1x128xf32>
      %103 = vector.shape_cast %100 : vector<1x128xf32> to vector<1x1x128xf32>
      tpu.vector_store %arg7[%c0_57, %c0_58, %c0_59], %103 {strides = array<i32>} : memref<1x1x128xf32, #tpu.memory_space<vmem>>, vector<1x1x128xf32>,
    } else {
    }
    return
  }
  func.func @transform_0(%arg0: i32, %arg1: i32) -> (i32, i32, i32, i32) {
    %c0_i32 = arith.constant 0 : i32
    %c0_i32_0 = arith.constant 0 : i32
    %c0_i32_1 = arith.constant 0 : i32
    return %arg1, %c0_i32, %arg0, %c0_i32_0 : i32, i32, i32, i32
  }
  func.func @transform_1(%arg0: i32, %arg1: i32) -> (i32, i32, i32, i32) {
    %c0_i32 = arith.constant 0 : i32
    %c0_i32_0 = arith.constant 0 : i32
    %c0_i32_1 = arith.constant 0 : i32
    return %arg1, %c0_i32, %arg0, %c0_i32_0 : i32, i32, i32, i32
  }
  func.func @transform_2(%arg0: i32, %arg1: i32) -> (i32, i32, i32, i32) {
    %c0_i32 = arith.constant 0 : i32
    %c0_i32_0 = arith.constant 0 : i32
    %c0_i32_1 = arith.constant 0 : i32
    return %arg1, %c0_i32, %arg0, %c0_i32_0 : i32, i32, i32, i32
  }
  func.func @transform_3(%arg0: i32, %arg1: i32) -> (i32, i32, i32, i32) {
    %c0_i32 = arith.constant 0 : i32
    %c0_i32_0 = arith.constant 0 : i32
    %c0_i32_1 = arith.constant 0 : i32
    return %arg1, %c0_i32, %arg0, %c0_i32_0 : i32, i32, i32, i32
  }
  func.func @transform_4(%arg0: i32, %arg1: i32) -> (i32, i32, i32) {
    %c0_i32 = arith.constant 0 : i32
    %c0_i32_0 = arith.constant 0 : i32
    %c0_i32_1 = arith.constant 0 : i32
    return %arg0, %c0_i32, %c0_i32_0 : i32, i32, i32
  }
  func.func @transform_5(%arg0: i32, %arg1: i32) -> (i32, i32, i32) {
    %c0_i32 = arith.constant 0 : i32
    %c0_i32_0 = arith.constant 0 : i32
    %c0_i32_1 = arith.constant 0 : i32
    return %arg0, %c0_i32, %c0_i32_0 : i32, i32, i32
  }
}

</mosaic_0001>

<llo_original>
// kernel: tpu_custom_call.1
$region0: #{tpu_custom_call.1}
  #allocation0 [shape = 'u32[]', space=smem, size = 0x4, offset = 0x4, fixed_abs, tag = 'smem constant byte address 0x4 - core index']
  #allocation1 [shape = 'u32[144,128]{1,0:T(1,128)}', space=vmem, size = 0x12000, scoped, tag = 'internal scratch']
  #allocation2 [shape = 'f32[8,128]{1,0:T(8,128)}', space=vmem, size = 0x1000, scoped, tag = 'scratch operand']
  #allocation3 [shape = 'f32[8,128]{1,0:T(8,128)}', space=vmem, size = 0x1000, scoped, tag = 'scratch operand']
  %s0 = inlined_call_operand.hbm [shape: f32[2,4,8,128], index: 0, kind: input, shape index: {}]
  %s1 = inlined_call_operand.hbm [shape: f32[2,4,8,128], index: 1, kind: input, shape index: {}]
  %s2 = inlined_call_operand.hbm [shape: f32[2,4,8,128], index: 2, kind: input, shape index: {}]
  %s3 = inlined_call_operand.hbm [shape: f32[2,4,8,128], index: 3, kind: input, shape index: {}]
  %s4 = inlined_call_operand.hbm [shape: f32[1,1,128], index: 4, kind: output, shape index: {0}]
  %s5 = inlined_call_operand.hbm [shape: f32[1,1,128], index: 5, kind: output, shape index: {1}]
  %6 = xla_tuple %s4, %s5
  %s7 = sld [smem:[#allocation0]]
  $region81: #{tpu_custom_call.1} parent=0
    _
  %s9 = ssub.s32 1, %s7
  %s10 = scalar_select 0, %s9, %s7
  $region1: #{tpu_custom_call.1} parent=0
    #allocation4 [shape = 'u8[32768]{0}', space=vmem, size = 0x8000, scoped, tag = 'input window, operand 0']
    #allocation5 [shape = 's32[2]{0}', space=sflag, size = 0x8, scoped, tag = 'scoped memory for tpu_custom_call.1']
    #allocation6 [shape = 's32[2]{0}', space=sflag, size = 0x8, scoped, tag = 'scoped memory for tpu_custom_call.1']
    #allocation7 [shape = 'u8[32768]{0}', space=vmem, size = 0x8000, scoped, tag = 'input window, operand 1']
    #allocation8 [shape = 's32[2]{0}', space=sflag, size = 0x8, scoped, tag = 'scoped memory for tpu_custom_call.1']
    #allocation9 [shape = 'u8[32768]{0}', space=vmem, size = 0x8000, scoped, tag = 'input window, operand 2']
    #allocation10 [shape = 'u8[32768]{0}', space=vmem, size = 0x8000, scoped, tag = 'input window, operand 3']
    #allocation11 [shape = 's32[2]{0}', space=sflag, size = 0x8, scoped, tag = 'scoped memory for tpu_custom_call.1']
    #allocation12 [shape = 'u8[512]{0}', space=vmem, size = 0x400, scoped, tag = 'output window, operand 0, single buffered']
    #allocation13 [shape = 'u8[512]{0}', space=vmem, size = 0x400, scoped, tag = 'output window, operand 1, single buffered']
    #allocation14 [shape = 's32[1]{0}', space=sflag, size = 0x4, scoped, tag = 'scoped memory for tpu_custom_call.1']
    %11 = vsyncpa [#allocation5], 0
    %s12 = scalar_lea.sflag [#allocation5], 1
    %13 = vsyncpa %s12, 0
    %14 = vsyncpa [#allocation8], 0
    %s15 = scalar_lea.sflag [#allocation8], 1
    %16 = vsyncpa %s15, 0
    %17 = vsyncpa [#allocation11], 0
    %s18 = scalar_lea.sflag [#allocation11], 1
    %19 = vsyncpa %s18, 0
    %20 = vsyncpa [#allocation6], 0
    %21 = vsyncpa [#allocation14], 0
    loop: start=0, step=1, limit=4
    $region2: #{tpu_custom_call.1} parent=1 // loop_pre_header
      _
    $region3: #{tpu_custom_call.1} parent=1 // loop_header
      %s23 = sphi 0, %s27
      %p24 = scmp.ge.s32.totalorder %s23, 4
      %s30 = sphi 0, %s42
      %s31 = sphi 0, %s38
      %s32 = sphi 0, %s30
      %s33 = sphi 0, %s31
      %s34 = sphi 0, %s32
      %s35 = sphi 0, %s33
      %s47 = sphi 0, %s49
      %s50 = sphi 0, %s47
      %s51 = sphi 0, %s50
      %s67 = sphi 0, %s51
      %s75 = sphi 0, %s77
      %s78 = sphi 0, %s75
      %s79 = sphi 0, %s78
      %s95 = sphi 0, %s79
      %s103 = sphi 0, %s105
      %s106 = sphi 0, %s103
      %s107 = sphi 0, %s106
      %s123 = sphi 0, %s107
      %s131 = sphi 0, %s133
      %s134 = sphi 0, %s131
      %s135 = sphi 0, %s134
      %s151 = sphi 0, %s135
      %s157 = sphi 0, %s159
      %s160 = sphi 0, %s157
      %s161 = sphi 0, %s160
      %s177 = sphi 0, %s161
      %s183 = sphi 0, %s185
      %s186 = sphi 0, %s183
      %s187 = sphi 0, %s186
      %s203 = sphi 0, %s187
    $region4: #{tpu_custom_call.1} parent=1 // loop_header_branch
      %26 = sbr.rel (%p24) target = $region8
    $region5: #{tpu_custom_call.1} parent=1 // loop_body
      %s28 = ssub.s32 %s23, 1
      %s29 = ssub.s32 %s23, 2
      %s36 = sadd.s32 1, %s31
      %p37 = scmp.ge.s32.totalorder %s36, 2
      %s38 = scalar_select %p37, 0, %s36
      %s39 = sadd.s32 1, %s30
      %s40 = scalar_select %p37, %s39, %s30
      %p41 = scmp.ge.s32.totalorder %s40, 1
      %s42 = scalar_select %p41, 0, %s40
      %s43 = ssub.s32 %s31, %s38
      %s44 = ssub.s32 %s30, %s42
      %s45 = sor.u32 %s43, %s44
      %p46 = scmp.eq.s32.totalorder %s45, 0
      %s48 = sadd.s32 %s47, 1
      %s49 = scalar_select %p46, %s47, %s48
      %p52 = pneg %p46
      %p53 = scmp.eq.s32.totalorder %s23, 1
      %p54 = por %p52, %p53
      %p55 = scmp.ne.s32.totalorder %s47, %s50
      %p56 = scmp.eq.s32.totalorder %s23, 0
      %p57 = por %p55, %p56
      %p58 = scmp.ne.s32.totalorder %s47, %s50
      %p59 = scmp.eq.s32.totalorder %s28, 1
      %p60 = por %p58, %p59
      %p61 = scmp.ne.s32.totalorder %s50, %s51
      %p62 = scmp.eq.s32.totalorder %s28, 0
      %p63 = por %p61, %p62
      %p64 = scmp.ne.s32.totalorder %s50, %s51
      %p65 = scmp.eq.s32.totalorder %s29, 1
      %p66 = por %p64, %p65
      %p68 = scmp.ne.s32.totalorder %s51, %s67
      %p69 = scmp.eq.s32.totalorder %s29, 0
      %p70 = por %p68, %p69
      %s71 = ssub.s32 %s31, %s38
      %s72 = ssub.s32 %s30, %s42
      %s73 = sor.u32 %s71, %s72
      %p74 = scmp.eq.s32.totalorder %s73, 0
      %s76 = sadd.s32 %s75, 1
      %s77 = scalar_select %p74, %s75, %s76
      %p80 = pneg %p74
      %p81 = scmp.eq.s32.totalorder %s23, 1
      %p82 = por %p80, %p81
      %p83 = scmp.ne.s32.totalorder %s75, %s78
      %p84 = scmp.eq.s32.totalorder %s23, 0
      %p85 = por %p83, %p84
      %p86 = scmp.ne.s32.totalorder %s75, %s78
      %p87 = scmp.eq.s32.totalorder %s28, 1
      %p88 = por %p86, %p87
      %p89 = scmp.ne.s32.totalorder %s78, %s79
      %p90 = scmp.eq.s32.totalorder %s28, 0
      %p91 = por %p89, %p90
      %p92 = scmp.ne.s32.totalorder %s78, %s79
      %p93 = scmp.eq.s32.totalorder %s29, 1
      %p94 = por %p92, %p93
      %p96 = scmp.ne.s32.totalorder %s79, %s95
      %p97 = scmp.eq.s32.totalorder %s29, 0
      %p98 = por %p96, %p97
      %s99 = ssub.s32 %s31, %s38
      %s100 = ssub.s32 %s30, %s42
      %s101 = sor.u32 %s99, %s100
      %p102 = scmp.eq.s32.totalorder %s101, 0
      %s104 = sadd.s32 %s103, 1
      %s105 = scalar_select %p102, %s103, %s104
      %p108 = pneg %p102
      %p109 = scmp.eq.s32.totalorder %s23, 1
      %p110 = por %p108, %p109
      %p111 = scmp.ne.s32.totalorder %s103, %s106
      %p112 = scmp.eq.s32.totalorder %s23, 0
      %p113 = por %p111, %p112
      %p114 = scmp.ne.s32.totalorder %s103, %s106
      %p115 = scmp.eq.s32.totalorder %s28, 1
      %p116 = por %p114, %p115
      %p117 = scmp.ne.s32.totalorder %s106, %s107
      %p118 = scmp.eq.s32.totalorder %s28, 0
      %p119 = por %p117, %p118
      %p120 = scmp.ne.s32.totalorder %s106, %s107
      %p121 = scmp.eq.s32.totalorder %s29, 1
      %p122 = por %p120, %p121
      %p124 = scmp.ne.s32.totalorder %s107, %s123
      %p125 = scmp.eq.s32.totalorder %s29, 0
      %p126 = por %p124, %p125
      %s127 = ssub.s32 %s31, %s38
      %s128 = ssub.s32 %s30, %s42
      %s129 = sor.u32 %s127, %s128
      %p130 = scmp.eq.s32.totalorder %s129, 0
      %s132 = sadd.s32 %s131, 1
      %s133 = scalar_select %p130, %s131, %s132
      %p136 = pneg %p130
      %p137 = scmp.eq.s32.totalorder %s23, 1
      %p138 = por %p136, %p137
      %p139 = scmp.ne.s32.totalorder %s131, %s134
      %p140 = scmp.eq.s32.totalorder %s23, 0
      %p141 = por %p139, %p140
      %p142 = scmp.ne.s32.totalorder %s131, %s134
      %p143 = scmp.eq.s32.totalorder %s28, 1
      %p144 = por %p142, %p143
      %p145 = scmp.ne.s32.totalorder %s134, %s135
      %p146 = scmp.eq.s32.totalorder %s28, 0
      %p147 = por %p145, %p146
      %p148 = scmp.ne.s32.totalorder %s134, %s135
      %p149 = scmp.eq.s32.totalorder %s29, 1
      %p150 = por %p148, %p149
      %p152 = scmp.ne.s32.totalorder %s135, %s151
      %p153 = scmp.eq.s32.totalorder %s29, 0
      %p154 = por %p152, %p153
      %s155 = ssub.s32 %s30, %s42
      %p156 = scmp.eq.s32.totalorder %s155, 0
      %s158 = sadd.s32 %s157, 1
      %s159 = scalar_select %p156, %s157, %s158
      %p162 = pneg %p156
      %p163 = scmp.eq.s32.totalorder %s23, 1
      %p164 = por %p162, %p163
      %p165 = scmp.ne.s32.totalorder %s157, %s160
      %p166 = scmp.eq.s32.totalorder %s23, 0
      %p167 = por %p165, %p166
      %p168 = scmp.ne.s32.totalorder %s157, %s160
      %p169 = scmp.eq.s32.totalorder %s28, 1
      %p170 = por %p168, %p169
      %p171 = scmp.ne.s32.totalorder %s160, %s161
      %p172 = scmp.eq.s32.totalorder %s28, 0
      %p173 = por %p171, %p172
      %p174 = scmp.ne.s32.totalorder %s160, %s161
      %p175 = scmp.eq.s32.totalorder %s29, 1
      %p176 = por %p174, %p175
      %p178 = scmp.ne.s32.totalorder %s161, %s177
      %p179 = scmp.eq.s32.totalorder %s29, 0
      %p180 = por %p178, %p179
      %s181 = ssub.s32 %s30, %s42
      %p182 = scmp.eq.s32.totalorder %s181, 0
      %s184 = sadd.s32 %s183, 1
      %s185 = scalar_select %p182, %s183, %s184
      %p188 = pneg %p182
      %p189 = scmp.eq.s32.totalorder %s23, 1
      %p190 = por %p188, %p189
      %p191 = scmp.ne.s32.totalorder %s183, %s186
      %p192 = scmp.eq.s32.totalorder %s23, 0
      %p193 = por %p191, %p192
      %p194 = scmp.ne.s32.totalorder %s183, %s186
      %p195 = scmp.eq.s32.totalorder %s28, 1
      %p196 = por %p194, %p195
      %p197 = scmp.ne.s32.totalorder %s186, %s187
      %p198 = scmp.eq.s32.totalorder %s28, 0
      %p199 = por %p197, %p198
      %p200 = scmp.ne.s32.totalorder %s186, %s187
      %p201 = scmp.eq.s32.totalorder %s29, 1
      %p202 = por %p200, %p201
      %p204 = scmp.ne.s32.totalorder %s187, %s203
      %p205 = scmp.eq.s32.totalorder %s29, 0
      %p206 = por %p204, %p205
      %p207 = scmp.le.s32.totalorder 1, %s23
      %p208 = scmp.lt.s32.totalorder %s23, 3
      %p209 = pnand %p207, %p208
      %p210 = pneg %p209
      // Predicated region
      $region9: #{tpu_custom_call.1} parent=5 // pred_check
        _
      $region10: #{tpu_custom_call.1} parent=5 // pred_check_branch
        %212 = sbr.rel (%p209) target = $region12
      $region11: #{tpu_custom_call.1} parent=5 // pred_region
        %s213 = ssub.s32 %s23, 1
      $region12: #{tpu_custom_call.1} parent=5 // pred_fallthru
        _
      %p214 = scmp.lt.s32.totalorder %s23, 2
      // Predicated region
      $region13: #{tpu_custom_call.1} parent=5 // pred_check
        %p215 = pneg %p214
      $region14: #{tpu_custom_call.1} parent=5 // pred_check_branch
        %217 = sbr.rel (%p215) target = $region16
      $region15: #{tpu_custom_call.1} parent=5 // pred_region
        // Predicated region
        $region17: #{tpu_custom_call.1} parent=15 // pred_check
          %p218 = pneg %p57
        $region18: #{tpu_custom_call.1} parent=15 // pred_check_branch
          %220 = sbr.rel (%p218) target = $region20
        $region19: #{tpu_custom_call.1} parent=15 // pred_region
          %s221 = sand.u32 %s47, 1
          %s222 = scalar_lea.sflag [#allocation5], %s221
          %s223 = sand.u32 %s47, 1
          %s224 = smul.addr %s223, 32
          %s225 = scalar_lea.vmem [#allocation4], %s224
          %s227 = ssub.s32 512, 512
          %228 = vsyncadd %s222, %s227
          %s229 = smul.addr %s31, 4
          %s230 = sadd.s32 %s30, %s229
          %s231 = smul.addr %s230, 128
          %s232 = scalar_lea.hbm %s0, %s231
          %s233 = sshll.u32 %s225, 4
          %s234 = int_to_ptr.vmem [resolvable:$true] %s233
          %239 = dma.hbm_to_vmem [thread:$0]  %s232, 512, %s234, %s222, 128, 128, 8
        $region20: #{tpu_custom_call.1} parent=15 // pred_fallthru
          _
        // Predicated region
        $region21: #{tpu_custom_call.1} parent=15 // pred_check
          %p240 = pneg %p85
        $region22: #{tpu_custom_call.1} parent=15 // pred_check_branch
          %242 = sbr.rel (%p240) target = $region24
        $region23: #{tpu_custom_call.1} parent=15 // pred_region
          %s243 = sand.u32 %s23, 1
          %s244 = scalar_lea.sflag [#allocation8], %s243
          %s245 = sand.u32 %s75, 1
          %s246 = smul.addr %s245, 32
          %s247 = scalar_lea.vmem [#allocation7], %s246
          %s249 = ssub.s32 512, 512
          %250 = vsyncadd %s244, %s249
          %s251 = smul.addr %s31, 4
          %s252 = sadd.s32 %s30, %s251
          %s253 = smul.addr %s252, 128
          %s254 = scalar_lea.hbm %s1, %s253
          %s255 = sshll.u32 %s247, 4
          %s256 = int_to_ptr.vmem [resolvable:$true] %s255
          %261 = dma.hbm_to_vmem [thread:$0]  %s254, 512, %s256, %s244, 128, 128, 8
        $region24: #{tpu_custom_call.1} parent=15 // pred_fallthru
          _
        // Predicated region
        $region25: #{tpu_custom_call.1} parent=15 // pred_check
          %p262 = pneg %p113
        $region26: #{tpu_custom_call.1} parent=15 // pred_check_branch
          %264 = sbr.rel (%p262) target = $region28
        $region27: #{tpu_custom_call.1} parent=15 // pred_region
          %s265 = sand.u32 %s23, 1
          %s266 = scalar_lea.sflag [#allocation8], %s265
          %s267 = sand.u32 %s103, 1
          %s268 = smul.addr %s267, 32
          %s269 = scalar_lea.vmem [#allocation9], %s268
          %s271 = ssub.s32 512, 512
          %272 = vsyncadd %s266, %s271
          %s273 = smul.addr %s31, 4
          %s274 = sadd.s32 %s30, %s273
          %s275 = smul.addr %s274, 128
          %s276 = scalar_lea.hbm %s2, %s275
          %s277 = sshll.u32 %s269, 4
          %s278 = int_to_ptr.vmem [resolvable:$true] %s277
          %283 = dma.hbm_to_vmem [thread:$0]  %s276, 512, %s278, %s266, 128, 128, 8
        $region28: #{tpu_custom_call.1} parent=15 // pred_fallthru
          _
        // Predicated region
        $region29: #{tpu_custom_call.1} parent=15 // pred_check
          %p284 = pneg %p141
        $region30: #{tpu_custom_call.1} parent=15 // pred_check_branch
          %286 = sbr.rel (%p284) target = $region32
        $region31: #{tpu_custom_call.1} parent=15 // pred_region
          %s287 = sand.u32 %s131, 1
          %s288 = scalar_lea.sflag [#allocation11], %s287
          %s289 = sand.u32 %s131, 1
          %s290 = smul.addr %s289, 32
          %s291 = scalar_lea.vmem [#allocation10], %s290
          %s293 = ssub.s32 512, 512
          %294 = vsyncadd %s288, %s293
          %s295 = smul.addr %s31, 4
          %s296 = sadd.s32 %s30, %s295
          %s297 = smul.addr %s296, 128
          %s298 = scalar_lea.hbm %s3, %s297
          %s299 = sshll.u32 %s291, 4
          %s300 = int_to_ptr.vmem [resolvable:$true] %s299
          %305 = dma.hbm_to_vmem [thread:$0]  %s298, 512, %s300, %s288, 128, 128, 8
        $region32: #{tpu_custom_call.1} parent=15 // pred_fallthru
          _
      $region16: #{tpu_custom_call.1} parent=5 // pred_fallthru
        _
      %p306 = scmp.le.s32.totalorder 1, %s23
      %p307 = scmp.lt.s32.totalorder %s23, 3
      %p308 = pnand %p306, %p307
      %p309 = pneg %p308
      // Predicated region
      $region33: #{tpu_custom_call.1} parent=5 // pred_check
        _
      $region34: #{tpu_custom_call.1} parent=5 // pred_check_branch
        %311 = sbr.rel (%p308) target = $region36
      $region35: #{tpu_custom_call.1} parent=5 // pred_region
        %s312 = ssub.s32 %s23, 1
        %s313 = sand.u32 %s50, 1
        %s314 = scalar_lea.sflag [#allocation5], %s313
        %s315 = sand.u32 %s50, 1
        %s316 = smul.addr %s315, 32
        %s317 = scalar_lea.vmem [#allocation4], %s316
        // Predicated region
        $region37: #{tpu_custom_call.1} parent=35 // pred_check
          %p318 = pneg %p63
        $region38: #{tpu_custom_call.1} parent=35 // pred_check_branch
          %320 = sbr.rel (%p318) target = $region40
        $region39: #{tpu_custom_call.1} parent=35 // pred_region
          %321 = dma.done %s314, 512
        $region40: #{tpu_custom_call.1} parent=35 // pred_fallthru
          _
        %s322 = sand.u32 %s28, 1
        %s323 = scalar_lea.sflag [#allocation8], %s322
        %s324 = sand.u32 %s78, 1
        %s325 = smul.addr %s324, 32
        %s326 = scalar_lea.vmem [#allocation7], %s325
        // Predicated region
        $region41: #{tpu_custom_call.1} parent=35 // pred_check
          %p327 = pneg %p91
        $region42: #{tpu_custom_call.1} parent=35 // pred_check_branch
          %329 = sbr.rel (%p327) target = $region44
        $region43: #{tpu_custom_call.1} parent=35 // pred_region
          %330 = dma.done %s323, 512
        $region44: #{tpu_custom_call.1} parent=35 // pred_fallthru
          _
        %s331 = sand.u32 %s28, 1
        %s332 = scalar_lea.sflag [#allocation8], %s331
        %s333 = sand.u32 %s106, 1
        %s334 = smul.addr %s333, 32
        %s335 = scalar_lea.vmem [#allocation9], %s334
        // Predicated region
        $region45: #{tpu_custom_call.1} parent=35 // pred_check
          %p336 = pneg %p119
        $region46: #{tpu_custom_call.1} parent=35 // pred_check_branch
          %338 = sbr.rel (%p336) target = $region48
        $region47: #{tpu_custom_call.1} parent=35 // pred_region
          %339 = dma.done %s332, 512
        $region48: #{tpu_custom_call.1} parent=35 // pred_fallthru
          _
        %s340 = sand.u32 %s134, 1
        %s341 = scalar_lea.sflag [#allocation11], %s340
        %s342 = sand.u32 %s134, 1
        %s343 = smul.addr %s342, 32
        %s344 = scalar_lea.vmem [#allocation10], %s343
        // Predicated region
        $region49: #{tpu_custom_call.1} parent=35 // pred_check
          %p345 = pneg %p147
        $region50: #{tpu_custom_call.1} parent=35 // pred_check_branch
          %347 = sbr.rel (%p345) target = $region52
        $region51: #{tpu_custom_call.1} parent=35 // pred_region
          %348 = dma.done %s341, 512
        $region52: #{tpu_custom_call.1} parent=35 // pred_fallthru
          _
        %s349 = sand.u32 %s50, 1
        %s350 = scalar_lea.sflag [#allocation5], %s349
        %s351 = sand.u32 %s50, 1
        %s352 = smul.addr %s351, 32
        %s353 = scalar_lea.vmem [#allocation4], %s352
        %p354 = pneg %p63
        %p355 = pneg %p60
        %s356 = sand.u32 %s28, 1
        %s357 = scalar_lea.sflag [#allocation8], %s356
        %s358 = sand.u32 %s78, 1
        %s359 = smul.addr %s358, 32
        %s360 = scalar_lea.vmem [#allocation7], %s359
        %p361 = pneg %p91
        %p362 = pneg %p88
        %s363 = sand.u32 %s28, 1
        %s364 = scalar_lea.sflag [#allocation8], %s363
        %s365 = sand.u32 %s106, 1
        %s366 = smul.addr %s365, 32
        %s367 = scalar_lea.vmem [#allocation9], %s366
        %p368 = pneg %p119
        %p369 = pneg %p116
        %s370 = sand.u32 %s134, 1
        %s371 = scalar_lea.sflag [#allocation11], %s370
        %s372 = sand.u32 %s134, 1
        %s373 = smul.addr %s372, 32
        %s374 = scalar_lea.vmem [#allocation10], %s373
        %p375 = pneg %p147
        %p376 = pneg %p144
        %p377 = pneg %p173
        %p378 = pneg %p170
        %p379 = pneg %p199
        %p380 = pneg %p196
        %p381 = scmp.eq.s32.totalorder %s33, 0
        // Predicated region
        $region53: #{tpu_custom_call.1} parent=35 // pred_check
          %p382 = pneg %p381
        $region54: #{tpu_custom_call.1} parent=35 // pred_check_branch
          %384 = sbr.rel (%p382) target = $region56
        $region55: #{tpu_custom_call.1} parent=35 // pred_region
          %385 = vst [vmem:[#allocation2] sm:$0xff] 0.0
          %386 = vst [vmem:[#allocation3] sm:$0xff] 0.0
        $region56: #{tpu_custom_call.1} parent=35 // pred_fallthru
          _
        %v387 = vld [vmem:[%s317] sm:$0xff]
        %v388 = vld [vmem:[%s317 + $0x8] sm:$0xff]
        %v389 = vld [vmem:[%s317 + $0x10] sm:$0xff]
        %v390 = vld [vmem:[%s317 + $0x18] sm:$0xff]
        %v391 = vld [vmem:[%s335] sm:$0xff]
        %v392 = vld [vmem:[%s335 + $0x8] sm:$0xff]
        %v393 = vld [vmem:[%s335 + $0x10] sm:$0xff]
        %v394 = vld [vmem:[%s335 + $0x18] sm:$0xff]
        %v395 = vmul.f32 %v387, 0.5
        %v396 = vmul.f32 %v388, 0.5
        %v397 = vmul.f32 %v389, 0.5
        %v398 = vmul.f32 %v390, 0.5
        %v399 = vmul.f32 %v391, 0.5
        %v400 = vmul.f32 %v392, 0.5
        %v401 = vmul.f32 %v393, 0.5
        %v402 = vmul.f32 %v394, 0.5
        %v403 = vmax.f32 %v395, %v396
        %v404 = vmax.f32 %v397, %v398
        %v405 = vmax.f32 %v403, %v404
        %v406 = vsub.f32 %v395, %v405
        %v407 = vsub.f32 %v396, %v405
        %v408 = vsub.f32 %v397, %v405
        %v409 = vsub.f32 %v398, %v405
        %v410 = vmul.f32 %v406, 1.442695
        %v411 = vpow.pop %v410
        %v412 = vmul.f32 %v407, 1.442695
        %v413 = vpow.pop %v412
        %v414 = vmul.f32 %v408, 1.442695
        %v415 = vpow.pop %v414
        %v416 = vmul.f32 %v409, 1.442695
        %v417 = vpow.pop %v416
        %v418 = vadd.f32 %v411, %v413
        %v419 = vadd.f32 %v418, %v415
        %v420 = vadd.f32 %v419, %v417
        %v421 = vlog2.pop %v420
        %v422 = vmul.f32 %v421, 0.6931472
        %v423 = vsub.f32 %v406, %v422
        %v424 = vsub.f32 %v407, %v422
        %v425 = vsub.f32 %v408, %v422
        %v426 = vsub.f32 %v409, %v422
        %v427 = vmax.f32 %v399, %v400
        %v428 = vmax.f32 %v401, %v402
        %v429 = vmax.f32 %v427, %v428
        %v430 = vsub.f32 %v399, %v429
        %v431 = vsub.f32 %v400, %v429
        %v432 = vsub.f32 %v401, %v429
        %v433 = vsub.f32 %v402, %v429
        %v434 = vmul.f32 %v430, 1.442695
        %v435 = vpow.pop %v434
        %v436 = vmul.f32 %v431, 1.442695
        %v437 = vpow.pop %v436
        %v438 = vmul.f32 %v432, 1.442695
        %v439 = vpow.pop %v438
        %v440 = vmul.f32 %v433, 1.442695
        %v441 = vpow.pop %v440
        %v442 = vadd.f32 %v435, %v437
        %v443 = vadd.f32 %v442, %v439
        %v444 = vadd.f32 %v443, %v441
        %v445 = vlog2.pop %v444
        %v446 = vmul.f32 %v445, 0.6931472
        %v447 = vsub.f32 %v430, %v446
        %v448 = vsub.f32 %v431, %v446
        %v449 = vsub.f32 %v432, %v446
        %v450 = vsub.f32 %v433, %v446
        %v451 = vsub.f32 %v447, %v423
        %v452 = vsub.f32 %v448, %v424
        %v453 = vsub.f32 %v449, %v425
        %v454 = vsub.f32 %v450, %v426
        %v455 = vmul.f32 %v435, %v451
        %v456 = vmul.f32 %v437, %v452
        %v457 = vmul.f32 %v439, %v453
        %v458 = vmul.f32 %v441, %v454
        %v459 = vadd.f32 %v455, %v456
        %v460 = vadd.f32 %v459, %v457
        %v461 = vadd.f32 %v460, %v458
        %v462 = vrcp.pop %v444
        %v463 = vmul.f32 %v461, %v462
        %v464 = vld [vmem:[#allocation2] sm:$0xff]
        %v465 = vadd.f32 %v464, %v463
        %466 = vst [vmem:[#allocation2] sm:$0xff] %v465
        %v467 = vsub.f32 %v387, %v391
        %v468 = vsub.f32 %v388, %v392
        %v469 = vsub.f32 %v389, %v393
        %v470 = vsub.f32 %v390, %v394
        %v471 = vld [vmem:[#allocation3] sm:$0xff]
        %v472 = vmul.f32 %v467, %v467
        %v473 = vmul.f32 %v468, %v468
        %v474 = vmul.f32 %v469, %v469
        %v475 = vmul.f32 %v470, %v470
        %v476 = vadd.f32 %v472, %v473
        %v477 = vadd.f32 %v476, %v474
        %v478 = vadd.f32 %v477, %v475
        %v479 = vadd.f32 %v471, %v478
        %480 = vst [vmem:[#allocation3] sm:$0xff] %v479
        %v481 = vld [vmem:[%s326] sm:$0xff]
        %v482 = vld [vmem:[%s326 + $0x8] sm:$0xff]
        %v483 = vld [vmem:[%s326 + $0x10] sm:$0xff]
        %v484 = vld [vmem:[%s326 + $0x18] sm:$0xff]
        %v485 = vld [vmem:[%s344] sm:$0xff]
        %v486 = vld [vmem:[%s344 + $0x8] sm:$0xff]
        %v487 = vld [vmem:[%s344 + $0x10] sm:$0xff]
        %v488 = vld [vmem:[%s344 + $0x18] sm:$0xff]
        %v489 = vmul.f32 %v481, 0.5
        %v490 = vmul.f32 %v482, 0.5
        %v491 = vmul.f32 %v483, 0.5
        %v492 = vmul.f32 %v484, 0.5
        %v493 = vmul.f32 %v485, 0.5
        %v494 = vmul.f32 %v486, 0.5
        %v495 = vmul.f32 %v487, 0.5
        %v496 = vmul.f32 %v488, 0.5
        %v497 = vmax.f32 %v489, %v490
        %v498 = vmax.f32 %v491, %v492
        %v499 = vmax.f32 %v497, %v498
        %v500 = vsub.f32 %v489, %v499
        %v501 = vsub.f32 %v490, %v499
        %v502 = vsub.f32 %v491, %v499
        %v503 = vsub.f32 %v492, %v499
        %v504 = vmul.f32 %v500, 1.442695
        %v505 = vpow.pop %v504
        %v506 = vmul.f32 %v501, 1.442695
        %v507 = vpow.pop %v506
        %v508 = vmul.f32 %v502, 1.442695
        %v509 = vpow.pop %v508
        %v510 = vmul.f32 %v503, 1.442695
        %v511 = vpow.pop %v510
        %v512 = vadd.f32 %v505, %v507
        %v513 = vadd.f32 %v512, %v509
        %v514 = vadd.f32 %v513, %v511
        %v515 = vlog2.pop %v514
        %v516 = vmul.f32 %v515, 0.6931472
        %v517 = vsub.f32 %v500, %v516
        %v518 = vsub.f32 %v501, %v516
        %v519 = vsub.f32 %v502, %v516
        %v520 = vsub.f32 %v503, %v516
        %v521 = vmax.f32 %v493, %v494
        %v522 = vmax.f32 %v495, %v496
        %v523 = vmax.f32 %v521, %v522
        %v524 = vsub.f32 %v493, %v523
        %v525 = vsub.f32 %v494, %v523
        %v526 = vsub.f32 %v495, %v523
        %v527 = vsub.f32 %v496, %v523
        %v528 = vmul.f32 %v524, 1.442695
        %v529 = vpow.pop %v528
        %v530 = vmul.f32 %v525, 1.442695
        %v531 = vpow.pop %v530
        %v532 = vmul.f32 %v526, 1.442695
        %v533 = vpow.pop %v532
        %v534 = vmul.f32 %v527, 1.442695
        %v535 = vpow.pop %v534
        %v536 = vadd.f32 %v529, %v531
        %v537 = vadd.f32 %v536, %v533
        %v538 = vadd.f32 %v537, %v535
        %v539 = vlog2.pop %v538
        %v540 = vmul.f32 %v539, 0.6931472
        %v541 = vsub.f32 %v524, %v540
        %v542 = vsub.f32 %v525, %v540
        %v543 = vsub.f32 %v526, %v540
        %v544 = vsub.f32 %v527, %v540
        %v545 = vsub.f32 %v541, %v517
        %v546 = vsub.f32 %v542, %v518
        %v547 = vsub.f32 %v543, %v519
        %v548 = vsub.f32 %v544, %v520
        %v549 = vmul.f32 %v529, %v545
        %v550 = vmul.f32 %v531, %v546
        %v551 = vmul.f32 %v533, %v547
        %v552 = vmul.f32 %v535, %v548
        %v553 = vadd.f32 %v549, %v550
        %v554 = vadd.f32 %v553, %v551
        %v555 = vadd.f32 %v554, %v552
        %v556 = vrcp.pop %v538
        %v557 = vmul.f32 %v555, %v556
        %v558 = vld [vmem:[#allocation2] sm:$0xff]
        %v559 = vadd.f32 %v558, %v557
        %560 = vst [vmem:[#allocation2] sm:$0xff] %v559
        %v561 = vsub.f32 %v481, %v485
        %v562 = vsub.f32 %v482, %v486
        %v563 = vsub.f32 %v483, %v487
        %v564 = vsub.f32 %v484, %v488
        %v565 = vld [vmem:[#allocation3] sm:$0xff]
        %v566 = vmul.f32 %v561, %v561
        %v567 = vmul.f32 %v562, %v562
        %v568 = vmul.f32 %v563, %v563
        %v569 = vmul.f32 %v564, %v564
        %v570 = vadd.f32 %v566, %v567
        %v571 = vadd.f32 %v570, %v568
        %v572 = vadd.f32 %v571, %v569
        %v573 = vadd.f32 %v565, %v572
        %574 = vst [vmem:[#allocation3] sm:$0xff] %v573
        %p575 = scmp.eq.s32.totalorder %s33, 1
        // Predicated region
        $region57: #{tpu_custom_call.1} parent=35 // pred_check
          %p576 = pneg %p575
        $region58: #{tpu_custom_call.1} parent=35 // pred_check_branch
          %578 = sbr.rel (%p576) target = $region60
        $region59: #{tpu_custom_call.1} parent=35 // pred_region
          %v579 = vld [vmem:[#allocation2] sm:$0xff]
          %v580 = vrot.slane %v579, 4
          %v581 = vadd.f32 %v579, %v580
          %v582 = vrot.slane %v581, 2
          %v583 = vadd.f32 %v581, %v582
          %v584 = vrot.slane %v583, 1
          %v585 = vadd.f32 %v583, %v584
          %586 = vst [vmem:[#allocation12] sm:$0x1] %v585
          %v587 = vld [vmem:[#allocation3] sm:$0xff]
          %v588 = vrot.slane %v587, 4
          %v589 = vadd.f32 %v587, %v588
          %v590 = vrot.slane %v589, 2
          %v591 = vadd.f32 %v589, %v590
          %v592 = vrot.slane %v591, 1
          %v593 = vadd.f32 %v591, %v592
          %594 = vst [vmem:[#allocation13] sm:$0x1] %v593
        $region60: #{tpu_custom_call.1} parent=35 // pred_fallthru
          _
        // Predicated region
        $region61: #{tpu_custom_call.1} parent=35 // pred_check
          %p595 = pneg %p170
        $region62: #{tpu_custom_call.1} parent=35 // pred_check_branch
          %597 = sbr.rel (%p595) target = $region64
        $region63: #{tpu_custom_call.1} parent=35 // pred_region
          %s599 = ssub.s32 16, 16
          %600 = vsyncadd [#allocation6], %s599
          %s601 = smul.addr %s32, 16
          %s602 = scalar_lea.hbm %s4, %s601
          %s604 = sshll.u32 [#allocation12], 4
          %s605 = int_to_ptr.vmem [resolvable:$true] %s604
          %607 = dma.vmem_to_hbm [thread:$0]  %s605, 16, %s602, [#allocation6]
        $region64: #{tpu_custom_call.1} parent=35 // pred_fallthru
          _
        // Predicated region
        $region65: #{tpu_custom_call.1} parent=35 // pred_check
          %p608 = pneg %p196
        $region66: #{tpu_custom_call.1} parent=35 // pred_check_branch
          %610 = sbr.rel (%p608) target = $region68
        $region67: #{tpu_custom_call.1} parent=35 // pred_region
          %s612 = ssub.s32 16, 16
          %613 = vsyncadd [#allocation14], %s612
          %s614 = smul.addr %s32, 16
          %s615 = scalar_lea.hbm %s5, %s614
          %s617 = sshll.u32 [#allocation13], 4
          %s618 = int_to_ptr.vmem [resolvable:$true] %s617
          %620 = dma.vmem_to_hbm [thread:$0]  %s618, 16, %s615, [#allocation14]
        $region68: #{tpu_custom_call.1} parent=35 // pred_fallthru
          _
        // Predicated region
        $region69: #{tpu_custom_call.1} parent=35 // pred_check
          %p621 = pneg %p170
        $region70: #{tpu_custom_call.1} parent=35 // pred_check_branch
          %623 = sbr.rel (%p621) target = $region72
        $region71: #{tpu_custom_call.1} parent=35 // pred_region
          %624 = dma.done [#allocation6], 16
        $region72: #{tpu_custom_call.1} parent=35 // pred_fallthru
          _
        // Predicated region
        $region73: #{tpu_custom_call.1} parent=35 // pred_check
          %p625 = pneg %p196
        $region74: #{tpu_custom_call.1} parent=35 // pred_check_branch
          %627 = sbr.rel (%p625) target = $region76
        $region75: #{tpu_custom_call.1} parent=35 // pred_region
          %628 = dma.done [#allocation14], 16
        $region76: #{tpu_custom_call.1} parent=35 // pred_fallthru
          _
      $region36: #{tpu_custom_call.1} parent=5 // pred_fallthru
        _
      %p629 = scmp.le.s32.totalorder 2, %s23
      // Predicated region
      $region77: #{tpu_custom_call.1} parent=5 // pred_check
        %p630 = pneg %p629
      $region78: #{tpu_custom_call.1} parent=5 // pred_check_branch
        %632 = sbr.rel (%p630) target = $region80
      $region79: #{tpu_custom_call.1} parent=5 // pred_region
        %s633 = ssub.s32 %s23, 2
      $region80: #{tpu_custom_call.1} parent=5 // pred_fallthru
        _
    $region6: #{tpu_custom_call.1} parent=1 // loop_footer
      %s27 = sadd.s32 1, %s23
    $region7: #{tpu_custom_call.1} parent=1 // loop_footer_branch
      %22 = sbr.rel target = $region3
    $region8: #{tpu_custom_call.1} parent=1 // loop_exit
      _
    %634 = vsyncpa [#allocation5], 1
    %s635 = scalar_lea.sflag [#allocation5], 1
    %636 = vsyncpa %s635, 1
    %637 = vsyncpa [#allocation8], 1
    %s638 = scalar_lea.sflag [#allocation8], 1
    %639 = vsyncpa %s638, 1
    %640 = vsyncpa [#allocation11], 1
    %s641 = scalar_lea.sflag [#allocation11], 1
    %642 = vsyncpa %s641, 1
    %643 = vsyncpa [#allocation6], 1
    %s644 = scalar_lea.sflag [#allocation6], 1
    %645 = vsyncpa %s644, 1
    %646 = vsyncpa [#allocation14], 1

</llo_original>
